<compile_context>
chip_gen: v7x
topology: tpu7x:2x2x1
jax: 0.10.0
libtpu: 0.0.40
codegen_flags: <defaults>
</compile_context>

<pallas_src>
import functools

import jax
import jax.numpy as jnp
from jax import lax
from jax.experimental import pallas as pl
from jax.experimental.pallas import tpu as pltpu


def _vmem_capacity_bytes():
    """Physical per-core VMEM bytes; conservative 64 MiB (v7x) fallback."""
    try:
        cap = int(getattr(pltpu.get_tpu_info(), "vmem_capacity_bytes", 0))
        if cap > 0:
            return cap
    except Exception:
        pass
    return 64 * 1024 * 1024


def _pick_block_rows(rows, hidden, itemsize, tile_budget_bytes):
    """Row tile: fits the VMEM budget (~24 B/elem for bf16 incl. f32 temps and
    double-buffered I/O), targets >= 8 grid steps, clamps to 256..1024 rows,
    multiple of 16 for full bf16 sublane packing."""
    rows = int(rows)
    if rows <= 256:
        return rows  # small problem: single full-extent block (always legal)
    # in dbl-buf (2*itemsize) + out dbl-buf (2*itemsize) + f32 temps (~16 B)
    bytes_per_elem = 4 * max(int(itemsize), 2) + 16
    budget_tm = max(16, tile_budget_bytes // (bytes_per_elem * max(int(hidden), 1)))
    # >= 8 steps when rows permit; 512-1024 row tiles already sit at ~85-86%
    # of HBM roofline, bigger only adds exposed ramp-up/down DMA.
    tm = min(budget_tm, 1024, max(256, pl.cdiv(rows, 8)))
    tm = max(16, tm - tm % 16)
    return int(tm)


def _rmsnorm_kernel(x_ref, w_ref, o_ref, *, eps):
    # x_ref: (tm, H) tile; w_ref: (1, H) float32 weight (pre-cast in wrapper).
    x = x_ref[...].astype(jnp.float32)
    # Row reduce on VPU/XLU, rsqrt on EUP: both off the DMA critical path.
    ms = jnp.mean(x * x, axis=-1, keepdims=True)   # (tm, 1)
    inv = lax.rsqrt(ms + eps)                      # (tm, 1)
    o_ref[...] = (x * inv * w_ref[...]).astype(o_ref.dtype)


def _rmsnorm_folded_kernel(x_ref, w_ref, s_ref, st_ref, o_ref, *, eps, inv_h):
    # x_ref: (tm, L) with L = k*H (k logical rows folded into the lane axis so
    # stores are unmasked full-lane vst).  Factorized segment sum:
    #   (tm,L) @ (L,k) -> per-segment sum(x^2), then @ (k,L) broadcasts it back
    # to each segment's lanes.  ~2*k flops/elem per matmul instead of 2*L for
    # the old (L,L) block-diagonal mask -> stays HBM-bound on v5e / v7x.
    x = x_ref[...].astype(jnp.float32)
    x2 = x * x
    seg_sum = jnp.dot(x2, s_ref[...], preferred_element_type=jnp.float32)      # (tm, k)
    seg_ms = jnp.dot(seg_sum, st_ref[...], preferred_element_type=jnp.float32) * inv_h  # (tm, L)
    inv = lax.rsqrt(seg_ms + eps)
    o_ref[...] = (x * inv * w_ref[...]).astype(o_ref.dtype)


def mixed_fused_rms_norm(x, weight, *, eps=1e-5, block_rows=None):
    """RMSNorm over trailing dims matching weight.shape; returns x.dtype."""
    norm_shape = tuple(weight.shape)
    n_norm = len(norm_shape)
    assert tuple(x.shape[-n_norm:]) == norm_shape, "normalized_shape mismatch"

    hidden = 1
    for d in norm_shape:
        hidden *= int(d)
    rows = 1
    for d in x.shape[:-n_norm]:
        rows *= int(d)

    x2d = x.reshape(rows, hidden)
    w_f32 = weight.reshape(-1).astype(jnp.float32)   # cast once, not per step

    cap = _vmem_capacity_bytes()
    # ~64 MiB cap (v5e/v6e), 0.75*64 MiB on v7x: big tiles, no over-commit.
    vmem_limit = min(64 * 1024 * 1024, int(cap * 0.75))
    tile_budget = int(vmem_limit * 0.8)
    itemsize = int(jnp.dtype(x.dtype).itemsize)

    compiler_params = pltpu.CompilerParams(
        dimension_semantics=("parallel",),   # megacore: shard row steps across TCs
        vmem_limit_bytes=vmem_limit,
    )

    # Lane-dense fold for small normalized dims: pack k rows into 128 lanes so
    # output stores are unmasked full-lane vst instead of masked partials.
    # Rows are padded up to a multiple of k (garbage rows computed, sliced off)
    # so every small-H shape stays on this fast path.
    # TODO(synk): H that neither divides into nor is a multiple of 128 (e.g. 96)
    # still takes the standard (masked-lane) path; lane padding would fix it.
    k = (128 // hidden) if (hidden < 128 and 128 % hidden == 0) else 1
    if k > 1:
        rows_pad = int(pl.cdiv(rows, k)) * k
        x2d_use = x2d if rows_pad == rows else jnp.pad(x2d, ((0, rows_pad - rows), (0, 0)))
        L = k * hidden
        rows_f = rows_pad // k
        x2d_f = x2d_use.reshape(rows_f, L)
        w_fold = jnp.tile(w_f32, (k,)).reshape(1, L)
        seg = jnp.arange(L, dtype=jnp.int32) // hidden                     # (L,)
        s_mat = (seg[:, None] == jnp.arange(k, dtype=jnp.int32)[None, :]).astype(jnp.float32)  # (L, k)
        st_mat = s_mat.T                                                    # (k, L)

        if block_rows is None:
            tm = _pick_block_rows(rows_f, L, itemsize, tile_budget)
        else:
            tm = rows_f if block_rows >= rows_f else max(16, block_rows - block_rows % 16)
        grid = (int(pl.cdiv(rows_f, tm)),)   # partial last block is masked by Pallas

        cost = pl.CostEstimate(
            flops=int(rows_f * L * (3 + 4 * k)),
            transcendentals=int(rows_pad),
            bytes_accessed=int(2 * rows_f * L * itemsize + L * 4 + L * k * 8),
        )

        out2d_f = pl.pallas_call(
            functools.partial(_rmsnorm_folded_kernel, eps=float(eps),
                              inv_h=1.0 / float(hidden)),
            out_shape=jax.ShapeDtypeStruct((rows_f, L), x.dtype),
            grid_spec=pltpu.PrefetchScalarGridSpec(
                num_scalar_prefetch=0,
                grid=grid,
                in_specs=[
                    pl.BlockSpec((tm, L), lambda i: (i, 0)),
                    pl.BlockSpec((1, L), lambda i: (0, 0)),   # constant -> fetched once
                    pl.BlockSpec((L, k), lambda i: (0, 0)),
                    pl.BlockSpec((k, L), lambda i: (0, 0)),
                ],
                out_specs=pl.BlockSpec((tm, L), lambda i: (i, 0)),
            ),
            compiler_params=compiler_params,
            cost_estimate=cost,
        )(x2d_f, w_fold, s_mat, st_mat)
        out2d = out2d_f.reshape(rows_pad, hidden)
        if rows_pad != rows:
            out2d = out2d[:rows]
        return out2d.reshape(x.shape)

    # Standard path (hidden >= 128, ideally a multiple of 128 -> lane-dense).
    if block_rows is None:
        tm = _pick_block_rows(rows, hidden, itemsize, tile_budget)
    else:
        tm = rows if block_rows >= rows else max(16, block_rows - block_rows % 16)
    grid = (int(pl.cdiv(rows, tm)),)         # partial last block is masked by Pallas

    cost = pl.CostEstimate(
        flops=int(3 * rows * hidden),
        transcendentals=int(rows),
        bytes_accessed=int(2 * rows * hidden * itemsize + hidden * 4),
    )

    out2d = pl.pallas_call(
        functools.partial(_rmsnorm_kernel, eps=float(eps)),
        out_shape=jax.ShapeDtypeStruct((rows, hidden), x.dtype),
        grid_spec=pltpu.PrefetchScalarGridSpec(
            num_scalar_prefetch=0,
            grid=grid,
            in_specs=[
                pl.BlockSpec((tm, hidden), lambda i: (i, 0)),
                pl.BlockSpec((1, hidden), lambda i: (0, 0)),  # constant -> fetched once
            ],
            out_specs=pl.BlockSpec((tm, hidden), lambda i: (i, 0)),
        ),
        compiler_params=compiler_params,
        cost_estimate=cost,
    )(x2d, w_f32.reshape(1, hidden))
    return out2d.reshape(x.shape)


def _reference(x, weight, eps=1e-5):
    x32 = x.astype(jnp.float32)
    ms = jnp.mean(x32 * x32, axis=-1, keepdims=True)
    y = x32 * lax.rsqrt(ms + eps) * weight.astype(jnp.float32)
    return y.astype(x.dtype)


def _check(x, weight, eps=1e-5):
    out = jax.block_until_ready(mixed_fused_rms_norm(x, weight, eps=eps))
    ref = _reference(x, weight, eps=eps)
    assert out.shape == x.shape and out.dtype == x.dtype
    assert jnp.allclose(out.astype(jnp.float32), ref.astype(jnp.float32),
                        atol=1e-2, rtol=1e-2)


if __name__ == "__main__":
    key = jax.random.PRNGKey(0)
    k1, k2, k3, k4 = jax.random.split(key, 4)

    # Case 1: small normalized dim (H=32 < 128), rows % k == 0 -> folded path.
    x1 = jax.random.normal(k1, (2, 8, 32), dtype=jnp.bfloat16)
    w1 = jnp.ones((32,), dtype=jnp.float32)     # reset_parameters(): ones_
    _check(x1, w1, eps=1e-5)

    # Case 2: small normalized dim, rows % k != 0 -> folded path with row pad.
    x2 = jax.random.normal(k2, (3, 7, 32), dtype=jnp.bfloat16)
    _check(x2, w1, eps=1e-5)

    # Case 3: lane-aligned normalized dim (H=128) -> standard path.
    x3 = jax.random.normal(k3, (5, 8, 128), dtype=jnp.bfloat16)
    w3 = jnp.ones((128,), dtype=jnp.float32)
    _check(x3, w3, eps=1e-5)

    # Case 4: float32 input, standard path.
    x4 = jax.random.normal(k4, (2, 4, 128), dtype=jnp.float32)
    _check(x4, w3, eps=1e-5)

    print("KERNEL_OK")
</pallas_src>

<mosaic_0001>
module attributes {stable_mosaic.version = 11 : i64} {
  func.func @_rmsnorm_folded_kernel(%arg0: i32, %arg1: memref<4x128xbf16, #tpu.memory_space<vmem>>, %arg2: memref<1x128xf32, #tpu.memory_space<vmem>>, %arg3: memref<128x4xf32, #tpu.memory_space<vmem>>, %arg4: memref<4x128xf32, #tpu.memory_space<vmem>>, %arg5: memref<4x128xbf16, #tpu.memory_space<vmem>>) attributes {dimension_semantics = [#tpu.dimension_semantics<parallel>], iteration_bounds = array<i64: 1>, scalar_prefetch = 0 : i64, scratch_operands = 0 : i64, tpu.core_type = #tpu.core_type<tc>, window_params = [{transform_indices = @transform_0, window_bounds = array<i64: 4, 128>}, {pipeline_mode = #tpu.pipeline_mode<synchronous>, transform_indices = @transform_1, window_bounds = array<i64: 1, 128>}, {pipeline_mode = #tpu.pipeline_mode<synchronous>, transform_indices = @transform_2, window_bounds = array<i64: 128, 4>}, {pipeline_mode = #tpu.pipeline_mode<synchronous>, transform_indices = @transform_3, window_bounds = array<i64: 4, 128>}, {transform_indices = @transform_4, window_bounds = array<i64: 4, 128>}]} {
    %c0 = arith.constant 0 : index
    %c0_0 = arith.constant 0 : index
    %0 = vector.load %arg1[%c0, %c0_0] : memref<4x128xbf16, #tpu.memory_space<vmem>>, vector<4x128xbf16>
    %1 = arith.extf %0 : vector<4x128xbf16> to vector<4x128xf32>
    %2 = arith.mulf %1, %1 : vector<4x128xf32>
    %c0_1 = arith.constant 0 : index
    %c0_2 = arith.constant 0 : index
    %3 = vector.load %arg3[%c0_1, %c0_2] : memref<128x4xf32, #tpu.memory_space<vmem>>, vector<128x4xf32>
    %cst = arith.constant dense<0.000000e+00> : vector<4x4xf32>
    %4 = tpu.matmul %2, %3, %cst {dimension_numbers = #tpu.dot_dimension_numbers<[1], [0], [0], [1], [0, 0, 1, 1], [], []>} : vector<4x128xf32>, vector<128x4xf32>, vector<4x4xf32> -> vector<4x4xf32>
    %c0_3 = arith.constant 0 : index
    %c0_4 = arith.constant 0 : index
    %5 = vector.load %arg4[%c0_3, %c0_4] : memref<4x128xf32, #tpu.memory_space<vmem>>, vector<4x128xf32>
    %cst_5 = arith.constant dense<0.000000e+00> : vector<4x128xf32>
    %6 = tpu.matmul %4, %5, %cst_5 {dimension_numbers = #tpu.dot_dimension_numbers<[1], [0], [0], [1], [0, 0, 1, 1], [], []>} : vector<4x4xf32>, vector<4x128xf32>, vector<4x128xf32> -> vector<4x128xf32>
    %cst_6 = arith.constant 3.125000e-02 : f32
    %7 = vector.broadcast %cst_6 : f32 to vector<4x128xf32>
    %8 = arith.mulf %6, %7 : vector<4x128xf32>
    %cst_7 = arith.constant 9.99999974E-6 : f32
    %9 = vector.broadcast %cst_7 : f32 to vector<4x128xf32>
    %10 = arith.addf %8, %9 : vector<4x128xf32>
    %11 = math.rsqrt %10 : vector<4x128xf32>
    %12 = arith.mulf %1, %11 : vector<4x128xf32>
    %c0_8 = arith.constant 0 : index
    %c0_9 = arith.constant 0 : index
    %13 = vector.load %arg2[%c0_8, %c0_9] : memref<1x128xf32, #tpu.memory_space<vmem>>, vector<1x128xf32>
    %14 = vector.broadcast %13 : vector<1x128xf32> to vector<4x128xf32>
    %15 = arith.mulf %12, %14 : vector<4x128xf32>
    %16 = arith.truncf %15 : vector<4x128xf32> to vector<4x128xbf16>
    %c0_10 = arith.constant 0 : index
    %c0_11 = arith.constant 0 : index
    %17 = vector.load %arg5[%c0_10, %c0_11] : memref<4x128xbf16, #tpu.memory_space<vmem>>, vector<4x128xbf16>
    tpu.vector_store %arg5[%c0_10, %c0_11], %16 {strides = array<i32>} : memref<4x128xbf16, #tpu.memory_space<vmem>>, vector<4x128xbf16>,
    return
  }
  func.func @transform_0(%arg0: i32) -> (i32, i32) {
    %c0_i32 = arith.constant 0 : i32
    %c0_i32_0 = arith.constant 0 : i32
    return %arg0, %c0_i32 : i32, i32
  }
  func.func @transform_1(%arg0: i32) -> (i32, i32) {
    %c0_i32 = arith.constant 0 : i32
    %c0_i32_0 = arith.constant 0 : i32
    %c0_i32_1 = arith.constant 0 : i32
    return %c0_i32, %c0_i32_0 : i32, i32
  }
  func.func @transform_2(%arg0: i32) -> (i32, i32) {
    %c0_i32 = arith.constant 0 : i32
    %c0_i32_0 = arith.constant 0 : i32
    %c0_i32_1 = arith.constant 0 : i32
    return %c0_i32, %c0_i32_0 : i32, i32
  }
  func.func @transform_3(%arg0: i32) -> (i32, i32) {
    %c0_i32 = arith.constant 0 : i32
    %c0_i32_0 = arith.constant 0 : i32
    %c0_i32_1 = arith.constant 0 : i32
    return %c0_i32, %c0_i32_0 : i32, i32
  }
  func.func @transform_4(%arg0: i32) -> (i32, i32) {
    %c0_i32 = arith.constant 0 : i32
    %c0_i32_0 = arith.constant 0 : i32
    return %arg0, %c0_i32 : i32, i32
  }
}

</mosaic_0001>

<llo_original>
// kernel: tpu_custom_call.1
$region0: #{tpu_custom_call.1}
  #allocation0 [shape = 'u32[]', space=smem, size = 0x4, offset = 0x4, fixed_abs, tag = 'smem constant byte address 0x4 - core index']
  #allocation1 [shape = 'u32[144,128]{1,0:T(1,128)}', space=vmem, size = 0x12000, scoped, tag = 'internal scratch']
  %s0 = inlined_call_operand.vmem [shape: bf16[4,128], index: 0, kind: input, shape index: {}]
  %s1 = inlined_call_operand.vmem [shape: f32[1,128], index: 1, kind: input, shape index: {}]
  %s2 = inlined_call_operand.vmem [shape: f32[128,4], index: 2, kind: input, shape index: {}]
  %s3 = inlined_call_operand.vmem [shape: f32[4,128], index: 3, kind: input, shape index: {}]
  %s4 = inlined_call_operand.hbm [shape: bf16[4,128], index: 4, kind: output, shape index: {}]
  %s5 = sld [smem:[#allocation0]]
  $region26: #{tpu_custom_call.1} parent=0
    _
  %s7 = ssub.s32 1, %s5
  %s8 = scalar_select 0, %s7, %s5
  $region1: #{tpu_custom_call.1} parent=0
    #allocation2 [shape = 'u8[1024]{0}', space=vmem, size = 0x400, scoped, tag = 'output window, operand 0, single buffered']
    #allocation3 [shape = 's32[1]{0}', space=sflag, size = 0x4, scoped, tag = 'scoped memory for tpu_custom_call.1']
    %9 = vsyncpa [#allocation3], 0
    // Predicated region
    $region2: #{tpu_custom_call.1} parent=1 // pred_check
      _
    $region3: #{tpu_custom_call.1} parent=1 // pred_check_branch
      %11 = sbr.rel (0) target = $region5
    $region4: #{tpu_custom_call.1} parent=1 // pred_region
      _
    $region5: #{tpu_custom_call.1} parent=1 // pred_fallthru
      _
    // Predicated region
    $region6: #{tpu_custom_call.1} parent=1 // pred_check
      _
    $region7: #{tpu_custom_call.1} parent=1 // pred_check_branch
      %13 = sbr.rel (0) target = $region9
    $region8: #{tpu_custom_call.1} parent=1 // pred_region
      _
    $region9: #{tpu_custom_call.1} parent=1 // pred_fallthru
      _
    // Predicated region
    $region10: #{tpu_custom_call.1} parent=1 // pred_check
      _
    $region11: #{tpu_custom_call.1} parent=1 // pred_check_branch
      %15 = sbr.rel (0) target = $region13
    $region12: #{tpu_custom_call.1} parent=1 // pred_region
      _
    $region13: #{tpu_custom_call.1} parent=1 // pred_fallthru
      _
    // Predicated region
    $region14: #{tpu_custom_call.1} parent=1 // pred_check
      _
    $region15: #{tpu_custom_call.1} parent=1 // pred_check_branch
      %17 = sbr.rel (0) target = $region17
    $region16: #{tpu_custom_call.1} parent=1 // pred_region
      _
    $region17: #{tpu_custom_call.1} parent=1 // pred_fallthru
      _
    %v18 = vld [vmem:[%s0] sm:$0x3]
    %v19 = vunpack.c.l.bf16 %v18
    %v20 = vmul.f32 %v19, %v19
    %v21 = vld [vmem:[%s2] sm:$0xff]
    %v22 = vld [vmem:[%s2 + $0x8] sm:$0xff]
    %v23 = vld [vmem:[%s2 + $0x10] sm:$0xff]
    %v24 = vld [vmem:[%s2 + $0x18] sm:$0xff]
    %v25 = vld [vmem:[%s2 + $0x20] sm:$0xff]
    %v26 = vld [vmem:[%s2 + $0x28] sm:$0xff]
    %v27 = vld [vmem:[%s2 + $0x30] sm:$0xff]
    %v28 = vld [vmem:[%s2 + $0x38] sm:$0xff]
    %v29 = vld [vmem:[%s2 + $0x40] sm:$0xff]
    %v30 = vld [vmem:[%s2 + $0x48] sm:$0xff]
    %v31 = vld [vmem:[%s2 + $0x50] sm:$0xff]
    %v32 = vld [vmem:[%s2 + $0x58] sm:$0xff]
    %v33 = vld [vmem:[%s2 + $0x60] sm:$0xff]
    %v34 = vld [vmem:[%s2 + $0x68] sm:$0xff]
    %v35 = vld [vmem:[%s2 + $0x70] sm:$0xff]
    %v36 = vld [vmem:[%s2 + $0x78] sm:$0xff]
    %37 = vmatprep.subr.mxu0 0.0
    %38 = vmatpush1.msra.mxu0 %v21
    %39 = vmatprep.subr.mxu0 0.0
    %40 = vmatpush1.msra.mxu0 %v22
    %41 = vmatprep.subr.mxu0 0.0
    %42 = vmatpush1.msra.mxu0 %v23
    %43 = vmatprep.subr.mxu0 0.0
    %44 = vmatpush1.msra.mxu0 %v24
    %45 = vmatprep.subr.mxu0 0.0
    %46 = vmatpush1.msra.mxu0 %v25
    %47 = vmatprep.subr.mxu0 0.0
    %48 = vmatpush1.msra.mxu0 %v26
    %49 = vmatprep.subr.mxu0 0.0
    %50 = vmatpush1.msra.mxu0 %v27
    %51 = vmatprep.subr.mxu0 0.0
    %52 = vmatpush1.msra.mxu0 %v28
    %53 = vmatprep.subr.mxu0 0.0
    %54 = vmatpush1.msra.mxu0 %v29
    %55 = vmatprep.subr.mxu0 0.0
    %56 = vmatpush1.msra.mxu0 %v30
    %57 = vmatprep.subr.mxu0 0.0
    %58 = vmatpush1.msra.mxu0 %v31
    %59 = vmatprep.subr.mxu0 0.0
    %60 = vmatpush1.msra.mxu0 %v32
    %61 = vmatprep.subr.mxu0 0.0
    %62 = vmatpush1.msra.mxu0 %v33
    %63 = vmatprep.subr.mxu0 0.0
    %64 = vmatpush1.msra.mxu0 %v34
    %65 = vmatprep.subr.mxu0 0.0
    %66 = vmatpush1.msra.mxu0 %v35
    %67 = vmatprep.subr.mxu0 0.0
    %68 = vmatpush1.msra.mxu0 %v36
    %69 = vmatprep.subr.mxu0 0.0
    %70 = vmatpush1.msra.mxu0 0.0
    %71 = vmatprep.subr.mxu0 0.0
    %72 = vmatpush1.msra.mxu0 0.0
    %73 = vmatprep.subr.mxu0 0.0
    %74 = vmatpush1.msra.mxu0 0.0
    %75 = vmatprep.subr.mxu0 0.0
    %76 = vmatpush1.msra.mxu0 0.0
    %77 = vmatprep.subr.mxu0 0.0
    %78 = vmatpush1.msra.mxu0 0.0
    %79 = vmatprep.subr.mxu0 0.0
    %80 = vmatpush1.msra.mxu0 0.0
    %81 = vmatprep.subr.mxu0 0.0
    %82 = vmatpush1.msra.mxu0 0.0
    %83 = vmatprep.subr.mxu0 0.0
    %84 = vmatpush1.msra.mxu0 0.0
    %85 = vmatprep.subr.mxu0 0.0
    %86 = vmatpush1.msra.mxu0 0.0
    %87 = vmatprep.subr.mxu0 0.0
    %88 = vmatpush1.msra.mxu0 0.0
    %89 = vmatprep.subr.mxu0 0.0
    %90 = vmatpush1.msra.mxu0 0.0
    %91 = vmatprep.subr.mxu0 0.0
    %92 = vmatpush1.msra.mxu0 0.0
    %93 = vmatprep.subr.mxu0 0.0
    %94 = vmatpush1.msra.mxu0 0.0
    %95 = vmatprep.subr.mxu0 0.0
    %96 = vmatpush1.msra.mxu0 0.0
    %97 = vmatprep.subr.mxu0 0.0
    %98 = vmatpush1.msra.mxu0 0.0
    %99 = vmatprep.subr.mxu0 0.0
    %100 = vmatpush1.msra.mxu0 0.0
    %101 = vmatprep.mubr.f32.mxu0 0.0
    %102 = vmatmul.mubr.f32.gmra.mrb[0].mxu0 %v20
    %v103 = vpop.f32.mrb[0].mxu0
    %v104 = vadd.f32 0.0, %v103
    %v105 = vpop.f32.mrb[0].mxu0
    %106 = vdwg.mxu0
    %v107 = vld [vmem:[%s3] sm:$0xf]
    %vm108 = vcmask 31744
    %v110 = vsel %vm108, %v104, 0
    %vm112 = vcmask 1043456
    %v114 = vsel %vm112, %v107, 0
    %116 = vmatprep.subr.mxu0 0.0
    %117 = vmatpush1.msra.mxu0 %v114
    %118 = vmatprep.subr.mxu0 0.0
    %119 = vmatpush1.msra.mxu0 0.0
    %120 = vmatprep.subr.mxu0 0.0
    %121 = vmatpush1.msra.mxu0 0.0
    %122 = vmatprep.subr.mxu0 0.0
    %123 = vmatpush1.msra.mxu0 0.0
    %124 = vmatprep.subr.mxu0 0.0
    %125 = vmatpush1.msra.mxu0 0.0
    %126 = vmatprep.subr.mxu0 0.0
    %127 = vmatpush1.msra.mxu0 0.0
    %128 = vmatprep.subr.mxu0 0.0
    %129 = vmatpush1.msra.mxu0 0.0
    %130 = vmatprep.subr.mxu0 0.0
    %131 = vmatpush1.msra.mxu0 0.0
    %132 = vmatprep.subr.mxu0 0.0
    %133 = vmatpush1.msra.mxu0 0.0
    %134 = vmatprep.subr.mxu0 0.0
    %135 = vmatpush1.msra.mxu0 0.0
    %136 = vmatprep.subr.mxu0 0.0
    %137 = vmatpush1.msra.mxu0 0.0
    %138 = vmatprep.subr.mxu0 0.0
    %139 = vmatpush1.msra.mxu0 0.0
    %140 = vmatprep.subr.mxu0 0.0
    %141 = vmatpush1.msra.mxu0 0.0
    %142 = vmatprep.subr.mxu0 0.0
    %143 = vmatpush1.msra.mxu0 0.0
    %144 = vmatprep.subr.mxu0 0.0
    %145 = vmatpush1.msra.mxu0 0.0
    %146 = vmatprep.subr.mxu0 0.0
    %147 = vmatpush1.msra.mxu0 0.0
    %148 = vmatprep.subr.mxu0 0.0
    %149 = vmatpush1.msra.mxu0 0.0
    %150 = vmatprep.subr.mxu0 0.0
    %151 = vmatpush1.msra.mxu0 0.0
    %152 = vmatprep.subr.mxu0 0.0
    %153 = vmatpush1.msra.mxu0 0.0
    %154 = vmatprep.subr.mxu0 0.0
    %155 = vmatpush1.msra.mxu0 0.0
    %156 = vmatprep.subr.mxu0 0.0
    %157 = vmatpush1.msra.mxu0 0.0
    %158 = vmatprep.subr.mxu0 0.0
    %159 = vmatpush1.msra.mxu0 0.0
    %160 = vmatprep.subr.mxu0 0.0
    %161 = vmatpush1.msra.mxu0 0.0
    %162 = vmatprep.subr.mxu0 0.0
    %163 = vmatpush1.msra.mxu0 0.0
    %164 = vmatprep.subr.mxu0 0.0
    %165 = vmatpush1.msra.mxu0 0.0
    %166 = vmatprep.subr.mxu0 0.0
    %167 = vmatpush1.msra.mxu0 0.0
    %168 = vmatprep.subr.mxu0 0.0
    %169 = vmatpush1.msra.mxu0 0.0
    %170 = vmatprep.subr.mxu0 0.0
    %171 = vmatpush1.msra.mxu0 0.0
    %172 = vmatprep.subr.mxu0 0.0
    %173 = vmatpush1.msra.mxu0 0.0
    %174 = vmatprep.subr.mxu0 0.0
    %175 = vmatpush1.msra.mxu0 0.0
    %176 = vmatprep.subr.mxu0 0.0
    %177 = vmatpush1.msra.mxu0 0.0
    %178 = vmatprep.subr.mxu0 0.0
    %179 = vmatpush1.msra.mxu0 0.0
    %180 = vmatprep.mubr.f32.mxu0 0.0
    %181 = vmatmul.mubr.f32.gmra.mrb[0].mxu0 %v110
    %v182 = vpop.f32.mrb[0].mxu0
    %v183 = vadd.f32 0.0, %v182
    %v184 = vpop.f32.mrb[0].mxu0
    %185 = vdwg.mxu0
    %v186 = vmul.f32 %v183, 0.03125
    %v187 = vadd.f32 %v186, 1e-05
    %v188 = vrsqrt.pop %v187
    %v189 = vmul.f32 %v19, %v188
    %v190 = vld [vmem:[%s1] sm:$0x1]
    %v192 = vlaneseq
    %v193 = vshrl.u32 %v192, 7
    %v194 = vsub.s32 0, %v193
    %v195 = vrot.slane %v190, %v194
    %v197 = vmul.f32 %v189, %v195
    %v198 = vpack.c.bf16 %v197, %v197
    %199 = vst [vmem:[#allocation2] sm:$0x3] %v198
    // Predicated region
    $region18: #{tpu_custom_call.1} parent=1 // pred_check
      _
    $region19: #{tpu_custom_call.1} parent=1 // pred_check_branch
      %201 = sbr.rel (0) target = $region21
    $region20: #{tpu_custom_call.1} parent=1 // pred_region
      %s203 = ssub.s32 32, 32
      %204 = vsyncadd [#allocation3], %s203
      %s206 = sshll.u32 [#allocation2], 4
      %s207 = int_to_ptr.vmem [resolvable:$true] %s206
      %209 = dma.vmem_to_hbm [thread:$0]  %s207, 32, %s4, [#allocation3]
    $region21: #{tpu_custom_call.1} parent=1 // pred_fallthru
      _
    // Predicated region
    $region22: #{tpu_custom_call.1} parent=1 // pred_check
      _
    $region23: #{tpu_custom_call.1} parent=1 // pred_check_branch
      %211 = sbr.rel (0) target = $region25
    $region24: #{tpu_custom_call.1} parent=1 // pred_region
      %212 = dma.done [#allocation3], 32
    $region25: #{tpu_custom_call.1} parent=1 // pred_fallthru
      _
    %213 = vsyncpa [#allocation3], 1

</llo_original>
